<compile_context>
chip_gen: v5e
topology: v5e:2x2
jax: 0.10.0
libtpu: 0.0.40
codegen_flags: <defaults>
</compile_context>

<pallas_src>
import math

import jax
import jax.numpy as jnp
from jax.experimental import pallas as pl
from jax.experimental.pallas import tpu as pltpu

_SQRT3 = math.sqrt(3.0)

_LANES = 128
_MAX_TILE_ROWS = 512  # ~2.9 MiB/step (11 f32 planes), x2 buffers -> well under 32 MiB scoped VMEM


def _sphere_kernel_l2(xyz_ref, out_ref):
    # xyz_ref: (3, TR, 128)   out_ref: (8, TR, 128) — pure VPU elementwise, memory-bound.
    x = xyz_ref[0]
    y = xyz_ref[1]
    z = xyz_ref[2]
    xx = x * x
    zz = z * z
    out_ref[0] = x
    out_ref[1] = y
    out_ref[2] = z
    out_ref[3] = _SQRT3 * x * z
    out_ref[4] = _SQRT3 * x * y
    out_ref[5] = y * y - 0.5 * (xx + zz)
    out_ref[6] = _SQRT3 * y * z
    out_ref[7] = (_SQRT3 / 2.0) * (zz - xx)


def _sublane_multiple(dtype) -> int:
    # f32 -> 8, bf16/f16 -> 16, int8/fp8 -> 32 (packed sublane tiles)
    itemsize = jnp.dtype(dtype).itemsize
    return max(8, 8 * (4 // max(1, itemsize)))


def sphere(edge_vec: jax.Array, l: int = 2) -> jax.Array:
    """JAX/Pallas equivalent of Sphere(l).forward(edge_vec)."""
    assert edge_vec.shape[-1] == 3, "edge_vec must have trailing dim 3"
    assert l in (1, 2)

    if l == 1:
        # stack([x, y, z], dim=-1) is exactly the input — no kernel / HBM traffic needed.
        return edge_vec

    lead = edge_vec.shape[:-1]
    N = 1
    for d in lead:
        N *= d

    sub = _sublane_multiple(edge_vec.dtype)
    rows_needed = max(sub, ((pl.cdiv(N, _LANES) + sub - 1) // sub) * sub)
    if rows_needed <= _MAX_TILE_ROWS:
        TR = rows_needed
        R = rows_needed
    else:
        TR = _MAX_TILE_ROWS
        R = pl.cdiv(rows_needed, TR) * TR
    pad = R * _LANES - N

    # One transpose + pad -> a single (3, R, 128) plane stack (single DMA stream into the kernel).
    xyz = edge_vec.reshape(N, 3).T                     # (3, N)
    xyz = jnp.pad(xyz, ((0, 0), (0, pad)))             # (3, R*128)
    xyz = xyz.reshape(3, R, _LANES)

    K = 8
    grid = (R // TR,)

    out_planes = pl.pallas_call(
        _sphere_kernel_l2,
        out_shape=jax.ShapeDtypeStruct((K, R, _LANES), edge_vec.dtype),
        grid_spec=pltpu.PrefetchScalarGridSpec(
            num_scalar_prefetch=0,
            grid=grid,
            in_specs=[pl.BlockSpec((3, TR, _LANES), lambda i: (0, i, 0))],
            out_specs=pl.BlockSpec((K, TR, _LANES), lambda i: (0, i, 0)),
        ),
        compiler_params=pltpu.CompilerParams(
            dimension_semantics=("parallel",),
        ),
    )(xyz)

    out = out_planes.reshape(K, R * _LANES)[:, :N]     # (K, N) drop padding
    out = jnp.moveaxis(out, 0, -1)                     # (N, K) — matches torch.stack(dim=-1)
    return out.reshape(lead + (K,))


def _reference(edge_vec: jax.Array, l: int = 2) -> jax.Array:
    x, y, z = edge_vec[..., 0], edge_vec[..., 1], edge_vec[..., 2]
    if l == 1:
        return jnp.stack([x, y, z], axis=-1)
    return jnp.stack(
        [
            x,
            y,
            z,
            _SQRT3 * x * z,
            _SQRT3 * x * y,
            y * y - 0.5 * (x * x + z * z),
            _SQRT3 * y * z,
            (_SQRT3 / 2.0) * (z * z - x * x),
        ],
        axis=-1,
    )


if __name__ == "__main__":
    key = jax.random.PRNGKey(0)

    # small shape: 2 graphs x 16 edges x 3-vector
    edge_vec = jax.random.normal(key, (2, 16, 3), dtype=jnp.float32)

    out = jax.block_until_ready(sphere(edge_vec, l=2))
    ref = _reference(edge_vec, l=2)
    assert out.shape == (2, 16, 8), out.shape
    assert out.dtype == edge_vec.dtype
    assert jnp.allclose(out, ref, atol=1e-6), float(jnp.max(jnp.abs(out - ref)))

    # l=1 path (identity short-circuit)
    out1 = jax.block_until_ready(sphere(edge_vec, l=1))
    assert out1.shape == (2, 16, 3)
    assert jnp.allclose(out1, _reference(edge_vec, l=1), atol=1e-6)

    # medium shape to exercise the multi-step row grid (2 tiles of 512 rows)
    key2 = jax.random.PRNGKey(0)
    edge_vec_big = jax.random.normal(key2, (70000, 3), dtype=jnp.float32)
    out_big = jax.block_until_ready(sphere(edge_vec_big, l=2))
    ref_big = _reference(edge_vec_big, l=2)
    assert out_big.shape == (70000, 8)
    assert jnp.allclose(out_big, ref_big, atol=1e-6), float(jnp.max(jnp.abs(out_big - ref_big)))

    print("KERNEL_OK")
</pallas_src>

<mosaic_0001>
module attributes {stable_mosaic.version = 11 : i64} {
  func.func @_sphere_kernel_l2(%arg0: i32, %arg1: memref<3x8x128xf32, #tpu.memory_space<vmem>>, %arg2: memref<8x8x128xf32, #tpu.memory_space<vmem>>) attributes {dimension_semantics = [#tpu.dimension_semantics<parallel>], iteration_bounds = array<i64: 1>, scalar_prefetch = 0 : i64, scratch_operands = 0 : i64, tpu.core_type = #tpu.core_type<tc>, window_params = [{transform_indices = @transform_0, window_bounds = array<i64: 3, 8, 128>}, {transform_indices = @transform_1, window_bounds = array<i64: 8, 8, 128>}]} {
    %c0 = arith.constant 0 : index
    %c0_0 = arith.constant 0 : index
    %c0_1 = arith.constant 0 : index
    %0 = vector.load %arg1[%c0, %c0_0, %c0_1] : memref<3x8x128xf32, #tpu.memory_space<vmem>>, vector<1x8x128xf32>
    %1 = vector.shape_cast %0 : vector<1x8x128xf32> to vector<8x128xf32>
    %c1 = arith.constant 1 : index
    %c0_2 = arith.constant 0 : index
    %c0_3 = arith.constant 0 : index
    %2 = vector.load %arg1[%c1, %c0_2, %c0_3] : memref<3x8x128xf32, #tpu.memory_space<vmem>>, vector<1x8x128xf32>
    %3 = vector.shape_cast %2 : vector<1x8x128xf32> to vector<8x128xf32>
    %c2 = arith.constant 2 : index
    %c0_4 = arith.constant 0 : index
    %c0_5 = arith.constant 0 : index
    %4 = vector.load %arg1[%c2, %c0_4, %c0_5] : memref<3x8x128xf32, #tpu.memory_space<vmem>>, vector<1x8x128xf32>
    %5 = vector.shape_cast %4 : vector<1x8x128xf32> to vector<8x128xf32>
    %6 = arith.mulf %1, %1 : vector<8x128xf32>
    %7 = arith.mulf %5, %5 : vector<8x128xf32>
    %c0_6 = arith.constant 0 : index
    %c0_7 = arith.constant 0 : index
    %c0_8 = arith.constant 0 : index
    %8 = vector.load %arg2[%c0_6, %c0_7, %c0_8] : memref<8x8x128xf32, #tpu.memory_space<vmem>>, vector<1x8x128xf32>
    %9 = vector.shape_cast %8 : vector<1x8x128xf32> to vector<8x128xf32>
    %10 = vector.shape_cast %1 : vector<8x128xf32> to vector<1x8x128xf32>
    tpu.vector_store %arg2[%c0_6, %c0_7, %c0_8], %10 {strides = array<i32>} : memref<8x8x128xf32, #tpu.memory_space<vmem>>, vector<1x8x128xf32>,
    %c1_9 = arith.constant 1 : index
    %c0_10 = arith.constant 0 : index
    %c0_11 = arith.constant 0 : index
    %11 = vector.load %arg2[%c1_9, %c0_10, %c0_11] : memref<8x8x128xf32, #tpu.memory_space<vmem>>, vector<1x8x128xf32>
    %12 = vector.shape_cast %11 : vector<1x8x128xf32> to vector<8x128xf32>
    %13 = vector.shape_cast %3 : vector<8x128xf32> to vector<1x8x128xf32>
    tpu.vector_store %arg2[%c1_9, %c0_10, %c0_11], %13 {strides = array<i32>} : memref<8x8x128xf32, #tpu.memory_space<vmem>>, vector<1x8x128xf32>,
    %c2_12 = arith.constant 2 : index
    %c0_13 = arith.constant 0 : index
    %c0_14 = arith.constant 0 : index
    %14 = vector.load %arg2[%c2_12, %c0_13, %c0_14] : memref<8x8x128xf32, #tpu.memory_space<vmem>>, vector<1x8x128xf32>
    %15 = vector.shape_cast %14 : vector<1x8x128xf32> to vector<8x128xf32>
    %16 = vector.shape_cast %5 : vector<8x128xf32> to vector<1x8x128xf32>
    tpu.vector_store %arg2[%c2_12, %c0_13, %c0_14], %16 {strides = array<i32>} : memref<8x8x128xf32, #tpu.memory_space<vmem>>, vector<1x8x128xf32>,
    %cst = arith.constant 1.73205078 : f32
    %17 = vector.broadcast %cst : f32 to vector<8x128xf32>
    %18 = arith.mulf %17, %1 : vector<8x128xf32>
    %19 = arith.mulf %18, %5 : vector<8x128xf32>
    %c3 = arith.constant 3 : index
    %c0_15 = arith.constant 0 : index
    %c0_16 = arith.constant 0 : index
    %20 = vector.load %arg2[%c3, %c0_15, %c0_16] : memref<8x8x128xf32, #tpu.memory_space<vmem>>, vector<1x8x128xf32>
    %21 = vector.shape_cast %20 : vector<1x8x128xf32> to vector<8x128xf32>
    %22 = vector.shape_cast %19 : vector<8x128xf32> to vector<1x8x128xf32>
    tpu.vector_store %arg2[%c3, %c0_15, %c0_16], %22 {strides = array<i32>} : memref<8x8x128xf32, #tpu.memory_space<vmem>>, vector<1x8x128xf32>,
    %cst_17 = arith.constant 1.73205078 : f32
    %23 = vector.broadcast %cst_17 : f32 to vector<8x128xf32>
    %24 = arith.mulf %23, %1 : vector<8x128xf32>
    %25 = arith.mulf %24, %3 : vector<8x128xf32>
    %c4 = arith.constant 4 : index
    %c0_18 = arith.constant 0 : index
    %c0_19 = arith.constant 0 : index
    %26 = vector.load %arg2[%c4, %c0_18, %c0_19] : memref<8x8x128xf32, #tpu.memory_space<vmem>>, vector<1x8x128xf32>
    %27 = vector.shape_cast %26 : vector<1x8x128xf32> to vector<8x128xf32>
    %28 = vector.shape_cast %25 : vector<8x128xf32> to vector<1x8x128xf32>
    tpu.vector_store %arg2[%c4, %c0_18, %c0_19], %28 {strides = array<i32>} : memref<8x8x128xf32, #tpu.memory_space<vmem>>, vector<1x8x128xf32>,
    %29 = arith.mulf %3, %3 : vector<8x128xf32>
    %30 = arith.addf %6, %7 : vector<8x128xf32>
    %cst_20 = arith.constant 5.000000e-01 : f32
    %31 = vector.broadcast %cst_20 : f32 to vector<8x128xf32>
    %32 = arith.mulf %31, %30 : vector<8x128xf32>
    %33 = arith.subf %29, %32 : vector<8x128xf32>
    %c5 = arith.constant 5 : index
    %c0_21 = arith.constant 0 : index
    %c0_22 = arith.constant 0 : index
    %34 = vector.load %arg2[%c5, %c0_21, %c0_22] : memref<8x8x128xf32, #tpu.memory_space<vmem>>, vector<1x8x128xf32>
    %35 = vector.shape_cast %34 : vector<1x8x128xf32> to vector<8x128xf32>
    %36 = vector.shape_cast %33 : vector<8x128xf32> to vector<1x8x128xf32>
    tpu.vector_store %arg2[%c5, %c0_21, %c0_22], %36 {strides = array<i32>} : memref<8x8x128xf32, #tpu.memory_space<vmem>>, vector<1x8x128xf32>,
    %cst_23 = arith.constant 1.73205078 : f32
    %37 = vector.broadcast %cst_23 : f32 to vector<8x128xf32>
    %38 = arith.mulf %37, %3 : vector<8x128xf32>
    %39 = arith.mulf %38, %5 : vector<8x128xf32>
    %c6 = arith.constant 6 : index
    %c0_24 = arith.constant 0 : index
    %c0_25 = arith.constant 0 : index
    %40 = vector.load %arg2[%c6, %c0_24, %c0_25] : memref<8x8x128xf32, #tpu.memory_space<vmem>>, vector<1x8x128xf32>
    %41 = vector.shape_cast %40 : vector<1x8x128xf32> to vector<8x128xf32>
    %42 = vector.shape_cast %39 : vector<8x128xf32> to vector<1x8x128xf32>
    tpu.vector_store %arg2[%c6, %c0_24, %c0_25], %42 {strides = array<i32>} : memref<8x8x128xf32, #tpu.memory_space<vmem>>, vector<1x8x128xf32>,
    %43 = arith.subf %7, %6 : vector<8x128xf32>
    %cst_26 = arith.constant 0.866025388 : f32
    %44 = vector.broadcast %cst_26 : f32 to vector<8x128xf32>
    %45 = arith.mulf %44, %43 : vector<8x128xf32>
    %c7 = arith.constant 7 : index
    %c0_27 = arith.constant 0 : index
    %c0_28 = arith.constant 0 : index
    %46 = vector.load %arg2[%c7, %c0_27, %c0_28] : memref<8x8x128xf32, #tpu.memory_space<vmem>>, vector<1x8x128xf32>
    %47 = vector.shape_cast %46 : vector<1x8x128xf32> to vector<8x128xf32>
    %48 = vector.shape_cast %45 : vector<8x128xf32> to vector<1x8x128xf32>
    tpu.vector_store %arg2[%c7, %c0_27, %c0_28], %48 {strides = array<i32>} : memref<8x8x128xf32, #tpu.memory_space<vmem>>, vector<1x8x128xf32>,
    return
  }
  func.func @transform_0(%arg0: i32) -> (i32, i32, i32) {
    %c0_i32 = arith.constant 0 : i32
    %c0_i32_0 = arith.constant 0 : i32
    %c0_i32_1 = arith.constant 0 : i32
    return %c0_i32, %arg0, %c0_i32_0 : i32, i32, i32
  }
  func.func @transform_1(%arg0: i32) -> (i32, i32, i32) {
    %c0_i32 = arith.constant 0 : i32
    %c0_i32_0 = arith.constant 0 : i32
    %c0_i32_1 = arith.constant 0 : i32
    return %c0_i32, %arg0, %c0_i32_0 : i32, i32, i32
  }
}

</mosaic_0001>

<llo_original>
// kernel: tpu_custom_call.1
$region0: #{tpu_custom_call.1}
  #allocation0 [shape = 'u32[]', space=smem, size = 0x4, offset = 0x4, fixed_abs, tag = 'smem constant byte address 0x4 - core index']
  #allocation1 [shape = 'u32[72,128]{1,0:T(1,128)}', space=vmem, size = 0x9000, scoped, tag = 'internal scratch']
  %s0 = inlined_call_operand.hbm [shape: f32[3,8,128], index: 0, kind: input, shape index: {}]
  %s1 = inlined_call_operand.hbm [shape: f32[8,8,128], index: 1, kind: output, shape index: {}]
  %s2 = sld [smem:[#allocation0]]
  $region18: #{tpu_custom_call.1} parent=0
    _
  %s4 = ssub.s32 1, %s2
  %s5 = scalar_select 0, %s4, %s2
  $region1: #{tpu_custom_call.1} parent=0
    #allocation2 [shape = 'u8[12288]{0}', space=vmem, size = 0x3000, scoped, tag = 'input window, operand 0, single buffered']
    #allocation3 [shape = 's32[1]{0}', space=sflag, size = 0x4, scoped, tag = 'scoped memory for tpu_custom_call.1']
    #allocation4 [shape = 's32[1]{0}', space=sflag, size = 0x4, scoped, tag = 'scoped memory for tpu_custom_call.1']
    #allocation5 [shape = 'u8[32768]{0}', space=vmem, size = 0x8000, scoped, tag = 'output window, operand 0, single buffered']
    %6 = vsyncpa [#allocation3], 0
    %7 = vsyncpa [#allocation4], 0
    // Predicated region
    $region2: #{tpu_custom_call.1} parent=1 // pred_check
      _
    $region3: #{tpu_custom_call.1} parent=1 // pred_check_branch
      %9 = sbr.rel (0) target = $region5
    $region4: #{tpu_custom_call.1} parent=1 // pred_region
      %11 = vsyncadd [#allocation3], 0
      %s12 = sshll.u32 %s0, 4
      %s13 = int_to_ptr.hbm [resolvable:$true] %s12
      %s14 = sshll.u32 [#allocation2], 4
      %s15 = int_to_ptr.vmem [resolvable:$true] %s14
      %20 = dma.hbm_to_vmem [thread:$0]  %s13, 384, %s15, [#allocation3], 128, 128, 8
    $region5: #{tpu_custom_call.1} parent=1 // pred_fallthru
      _
    // Predicated region
    $region6: #{tpu_custom_call.1} parent=1 // pred_check
      _
    $region7: #{tpu_custom_call.1} parent=1 // pred_check_branch
      %22 = sbr.rel (0) target = $region9
    $region8: #{tpu_custom_call.1} parent=1 // pred_region
      %24 = dma.done [#allocation3], 384
    $region9: #{tpu_custom_call.1} parent=1 // pred_fallthru
      _
    %v25 = vld [vmem:[#allocation2] sm:$0xff]
    %s26 = scalar_lea.vmem [#allocation2], 8
    %v27 = vld [vmem:[%s26] sm:$0xff]
    %s28 = scalar_lea.vmem [#allocation2], 16
    %v29 = vld [vmem:[%s28] sm:$0xff]
    %v30 = vmul.f32 %v25, %v25
    %v31 = vmul.f32 %v29, %v29
    %32 = vst [vmem:[#allocation5] sm:$0xff] %v25
    %s33 = scalar_lea.vmem [#allocation5], 8
    %34 = vst [vmem:[%s33] sm:$0xff] %v27
    %s35 = scalar_lea.vmem [#allocation5], 16
    %36 = vst [vmem:[%s35] sm:$0xff] %v29
    %v37 = vmul.f32 %v25, 1.7320508
    %v38 = vmul.f32 %v37, %v29
    %s39 = scalar_lea.vmem [#allocation5], 24
    %40 = vst [vmem:[%s39] sm:$0xff] %v38
    %v41 = vmul.f32 %v37, %v27
    %s42 = scalar_lea.vmem [#allocation5], 32
    %43 = vst [vmem:[%s42] sm:$0xff] %v41
    %v44 = vmul.f32 %v27, %v27
    %v45 = vadd.f32 %v30, %v31
    %v46 = vmul.f32 %v45, 0.5
    %v47 = vsub.f32 %v44, %v46
    %s48 = scalar_lea.vmem [#allocation5], 40
    %49 = vst [vmem:[%s48] sm:$0xff] %v47
    %v50 = vmul.f32 %v27, 1.7320508
    %v51 = vmul.f32 %v50, %v29
    %s52 = scalar_lea.vmem [#allocation5], 48
    %53 = vst [vmem:[%s52] sm:$0xff] %v51
    %v54 = vsub.f32 %v31, %v30
    %v55 = vmul.f32 %v54, 0.8660254
    %s56 = scalar_lea.vmem [#allocation5], 56
    %57 = vst [vmem:[%s56] sm:$0xff] %v55
    // Predicated region
    $region10: #{tpu_custom_call.1} parent=1 // pred_check
      _
    $region11: #{tpu_custom_call.1} parent=1 // pred_check_branch
      %59 = sbr.rel (0) target = $region13
    $region12: #{tpu_custom_call.1} parent=1 // pred_region
      %61 = vsyncadd [#allocation4], 0
      %s62 = sshll.u32 [#allocation5], 4
      %s63 = int_to_ptr.vmem [resolvable:$true] %s62
      %s64 = sshll.u32 %s1, 4
      %s65 = int_to_ptr.hbm [resolvable:$true] %s64
      %70 = dma.vmem_to_hbm [thread:$0]  %s63, 1024, %s65, [#allocation4], 128, 128, 8
    $region13: #{tpu_custom_call.1} parent=1 // pred_fallthru
      _
    // Predicated region
    $region14: #{tpu_custom_call.1} parent=1 // pred_check
      _
    $region15: #{tpu_custom_call.1} parent=1 // pred_check_branch
      %72 = sbr.rel (0) target = $region17
    $region16: #{tpu_custom_call.1} parent=1 // pred_region
      %74 = dma.done [#allocation4], 1024
    $region17: #{tpu_custom_call.1} parent=1 // pred_fallthru
      _
    %75 = vsyncpa [#allocation3], 1
    %76 = vsyncpa [#allocation4], 1

</llo_original>
